<compile_context>
chip_gen: v5e
topology: v5e:2x2
jax: 0.10.0
libtpu: 0.0.40
codegen_flags: <defaults>
</compile_context>

<pallas_src>
import jax
import jax.numpy as jnp
from jax.experimental import pallas as pl
from jax.experimental.pallas import tpu as pltpu


def _homo_loss_kernel(thrd_ref, xT_ref, idx_ref, w_ref, num_ref, den_ref):
    xT = xT_ref[...]                                   # (D+1, Np) bf16, VMEM-resident
    idx = idx_ref[...]                                 # (1, 2*TE) int32: [src || dst]
    w = w_ref[...].astype(jnp.float32)                 # (1, TE)

    R, Np = xT.shape
    D = R - 1                                          # last row = per-node ||x||^2
    TE = w.shape[1]

    # In-kernel gather via a single one-hot MXU matmul (bf16 operands, f32 acc):
    #   gT = xT_aug @ onehot([src || dst])  -> (D+1, 2*TE), edges on lanes.
    node_iota = jax.lax.broadcasted_iota(jnp.int32, (Np, 2 * TE), 0)
    onehot = (node_iota == idx).astype(xT.dtype)       # (Np, 2*TE) bf16, 0/1 exact

    gT = jnp.dot(xT, onehot, preferred_element_type=jnp.float32)  # (D+1, 2*TE) f32

    aT = gT[:, :TE]                                    # src endpoints (+ norm row)
    bT = gT[:, TE:]                                    # dst endpoints (+ norm row)

    dot = jnp.sum(aT[:D, :] * bT[:D, :], axis=0, keepdims=True)   # (1, TE)
    na2 = aT[D:D + 1, :]                               # gathered ||a||^2
    nb2 = bT[D:D + 1, :]                               # gathered ||b||^2

    # torch cosine_similarity: dot / max(||a||*||b||, eps)  (clamp the product).
    eps2 = jnp.float32(1e-8) * jnp.float32(1e-8)
    sims = dot * jax.lax.rsqrt(jnp.maximum(na2 * nb2, eps2))

    thrd = thrd_ref[0]                                 # SMEM scalar (f32)
    vals = jnp.maximum(thrd - sims, jnp.float32(0.0))  # relu(thrd - sim)
    mask = (w > 0.0).astype(jnp.float32)               # kept-edge indicator

    # Lane-dense per-tile partials; the tiny final reduce+divide is in the wrapper.
    num_ref[...] = vals * mask
    den_ref[...] = mask


def homo_loss(trigger_edge_index, trigger_edge_weights, x, thrd, *, tile_e=None):
    """Pallas implementation of HomoLoss.forward. Returns a scalar float32."""
    src = trigger_edge_index[0].astype(jnp.int32)
    dst = trigger_edge_index[1].astype(jnp.int32)
    E = src.shape[0]
    N, D = x.shape

    if E == 0:
        # torch: mean over an empty tensor is NaN.
        return jnp.float32(jnp.nan)

    # Pad node axis to a lane multiple (zero columns are never selected since
    # all indices are < N).
    Np = ((N + 127) // 128) * 128

    # Edge tile size: gated by the (Np, 2*tile_e) one-hot (bf16) + its int32
    # iota, not by the tiny per-edge accumulators.  ~8 MiB budget for them.
    E_min_pad = ((E + 127) // 128) * 128
    if tile_e is None:
        budget = 8 * 1024 * 1024
        per_edge = Np * 2 * (2 + 4)                    # bf16 one-hot + int32 iota
        te = budget // max(per_edge, 1)
        tile_e = max(128, min(2048, (te // 128) * 128))
    tile_e = min(tile_e, E_min_pad)
    assert tile_e % 128 == 0, "edge tile must be lane-aligned (multiple of 128)"

    num_tiles = pl.cdiv(E, tile_e)
    E_pad = num_tiles * tile_e
    pad = E_pad - E

    # Padded edges: index 0 (harmless, masked) and weight 0 (=> mask = 0).
    # Per-tile merged index layout: tile i holds [src tile i || dst tile i].
    src_p = jnp.pad(src, (0, pad)).reshape(num_tiles, tile_e)
    dst_p = jnp.pad(dst, (0, pad)).reshape(num_tiles, tile_e)
    idx_p = jnp.concatenate([src_p, dst_p], axis=1).reshape(1, num_tiles * 2 * tile_e)
    w_p = jnp.pad(trigger_edge_weights, (0, pad)).reshape(1, E_pad)

    # Feature slab: (D+1, Np) with last row = per-node squared norm, cast to
    # bf16 ONCE here (MXU operand); the elementwise tail stays f32 in-kernel.
    x32 = x.astype(jnp.float32)
    norms2 = jnp.sum(x32 * x32, axis=1)                              # (N,)
    xT_aug = jnp.concatenate([x32.T, norms2[None, :]], axis=0)       # (D+1, N)
    xT_aug = jnp.pad(xT_aug, ((0, 0), (0, Np - N))).astype(jnp.bfloat16)

    thrd_arr = jnp.asarray([thrd], dtype=jnp.float32)                # scalar prefetch

    # Advisory cost: one (D+1, Np) x (Np, 2*E_pad) bf16 matmul + per-edge tail.
    flops = 2 * (D + 1) * Np * 2 * E_pad + 8 * D * E_pad
    bytes_accessed = ((D + 1) * Np * 2 + 2 * E_pad * 4 + E_pad * 4 + 2 * E_pad * 4)
    cost = pl.CostEstimate(flops=int(flops), transcendentals=int(E_pad),
                           bytes_accessed=int(bytes_accessed))

    # Explicit VMEM budget: single-buffered slab + per-tile one-hot/iota/result.
    vmem_est = (
        (D + 1) * Np * 2                      # resident xT (bf16, Buffered(1))
        + 2 * (2 * tile_e * 4 + tile_e * 4)   # idx + w tiles, double-buffered
        + Np * 2 * tile_e * (2 + 4)           # one-hot (bf16) + iota (int32)
        + (D + 1) * 2 * tile_e * 4            # gathered gT (f32)
        + 12 * tile_e * 4                     # per-edge elementwise temporaries
        + 2 * 2 * tile_e * 4                  # two outputs, double-buffered
    )
    vmem_limit = int(min(64 << 20, max(16 << 20, 2 * vmem_est + (2 << 20))))

    # TODO(synk): for graphs where the (D+1, Np) slab + one-hots exceed ~half of
    # v7x's 64 MiB VMEM, add a second grid axis over node chunks and accumulate
    # dot/na2/nb2 per edge tile across chunks.
    num, den = pl.pallas_call(
        _homo_loss_kernel,
        out_shape=(jax.ShapeDtypeStruct((1, E_pad), jnp.float32),
                   jax.ShapeDtypeStruct((1, E_pad), jnp.float32)),
        grid_spec=pltpu.PrefetchScalarGridSpec(
            num_scalar_prefetch=1,                      # thrd lands in SMEM
            grid=(num_tiles,),
            in_specs=[
                pl.BlockSpec((D + 1, Np), lambda i, thrd: (0, 0),
                             pipeline_mode=pl.Buffered(1)),          # resident slab
                pl.BlockSpec((1, 2 * tile_e), lambda i, thrd: (0, i)),  # [src||dst] tile
                pl.BlockSpec((1, tile_e), lambda i, thrd: (0, i)),      # weight tile
            ],
            out_specs=[
                pl.BlockSpec((1, tile_e), lambda i, thrd: (0, i)),      # relu-term partials
                pl.BlockSpec((1, tile_e), lambda i, thrd: (0, i)),      # kept-edge mask
            ],
        ),
        compiler_params=pltpu.CompilerParams(
            dimension_semantics=("parallel",),          # independent edge tiles (dual-TC on v7x)
            vmem_limit_bytes=vmem_limit,
        ),
        cost_estimate=cost,
    )(thrd_arr, xT_aug, idx_p, w_p)

    # Masked mean; 0/0 -> NaN reproduces torch's mean over an empty tensor.
    return jnp.sum(num) / jnp.sum(den)


def _ref_homo_loss(trigger_edge_index, trigger_edge_weights, x, thrd):
    """Pure-JAX reference mirroring the PyTorch forward (torch eps semantics)."""
    keep = trigger_edge_weights > 0.0
    a = x[trigger_edge_index[0]].astype(jnp.float32)
    b = x[trigger_edge_index[1]].astype(jnp.float32)
    eps = 1e-8
    denom = jnp.maximum(jnp.linalg.norm(a, axis=1) * jnp.linalg.norm(b, axis=1), eps)
    sims = jnp.sum(a * b, axis=1) / denom
    vals = jnp.maximum(thrd - sims, 0.0)
    return jnp.sum(jnp.where(keep, vals, 0.0)) / jnp.sum(keep)


if __name__ == "__main__":
    key = jax.random.PRNGKey(0)
    k_x, k_idx, k_w = jax.random.split(key, 3)

    N, D, E = 16, 32, 16        # small shapes: 16 nodes, 32-dim features, 16 edges
    x = jax.random.normal(k_x, (N, D), dtype=jnp.float32)
    trigger_edge_index = jax.random.randint(k_idx, (2, E), 0, N, dtype=jnp.int32)
    # weights in [-0.5, 0.5] so roughly half the edges survive the > 0 filter
    trigger_edge_weights = jax.random.uniform(
        k_w, (E,), dtype=jnp.float32, minval=-0.5, maxval=0.5)
    thrd = 0.5

    loss = homo_loss(trigger_edge_index, trigger_edge_weights, x, thrd)
    loss = jax.block_until_ready(loss)

    ref = jax.block_until_ready(
        _ref_homo_loss(trigger_edge_index, trigger_edge_weights, x, thrd))
    # bf16 endpoint gather introduces ~1e-3 relative drift in the cosine sims
    # versus the pure-f32 torch reference; tolerance sized accordingly.
    assert jnp.allclose(loss, ref, rtol=2e-2, atol=2e-3), (loss, ref)

    print("KERNEL_OK")
</pallas_src>

<mosaic_0001>
module attributes {stable_mosaic.version = 11 : i64} {
  func.func @_homo_loss_kernel(%arg0: i32, %arg1: memref<1xf32, #tpu.memory_space<smem>>, %arg2: memref<33x128xbf16, #tpu.memory_space<vmem>>, %arg3: memref<1x256xi32, #tpu.memory_space<vmem>>, %arg4: memref<1x128xf32, #tpu.memory_space<vmem>>, %arg5: memref<1x128xf32, #tpu.memory_space<vmem>>, %arg6: memref<1x128xf32, #tpu.memory_space<vmem>>) attributes {dimension_semantics = [#tpu.dimension_semantics<parallel>], iteration_bounds = array<i64: 1>, scalar_prefetch = 1 : i64, scratch_operands = 0 : i64, tpu.core_type = #tpu.core_type<tc>, window_params = [{pipeline_mode = #tpu.pipeline_mode<synchronous>, transform_indices = @transform_0, window_bounds = array<i64: 33, 128>}, {transform_indices = @transform_1, window_bounds = array<i64: 1, 256>}, {transform_indices = @transform_2, window_bounds = array<i64: 1, 128>}, {transform_indices = @transform_3, window_bounds = array<i64: 1, 128>}, {transform_indices = @transform_4, window_bounds = array<i64: 1, 128>}]} {
    %c0 = arith.constant 0 : index
    %c0_0 = arith.constant 0 : index
    %0 = vector.load %arg2[%c0, %c0_0] : memref<33x128xbf16, #tpu.memory_space<vmem>>, vector<33x128xbf16>
    %c0_1 = arith.constant 0 : index
    %c0_2 = arith.constant 0 : index
    %1 = vector.load %arg3[%c0_1, %c0_2] : memref<1x256xi32, #tpu.memory_space<vmem>>, vector<1x256xi32>
    %c0_3 = arith.constant 0 : index
    %c0_4 = arith.constant 0 : index
    %2 = vector.load %arg4[%c0_3, %c0_4] : memref<1x128xf32, #tpu.memory_space<vmem>>, vector<1x128xf32>
    %3 = tpu.iota {dimensions = array<i32: 0>} : vector<128x256xi32>
    %4 = vector.broadcast %1 : vector<1x256xi32> to vector<128x256xi32>
    %5 = arith.cmpi eq, %3, %4 : vector<128x256xi32>
    %6 = arith.extui %5 : vector<128x256xi1> to vector<128x256xi32>
    %7 = arith.sitofp %6 : vector<128x256xi32> to vector<128x256xf32>
    %8 = arith.truncf %7 : vector<128x256xf32> to vector<128x256xbf16>
    %cst = arith.constant dense<0.000000e+00> : vector<33x256xf32>
    %9 = tpu.matmul %0, %8, %cst {dimension_numbers = #tpu.dot_dimension_numbers<[1], [0], [0], [1], [0, 0, 1, 1], [], []>} : vector<33x128xbf16>, vector<128x256xbf16>, vector<33x256xf32> -> vector<33x256xf32>
    %10 = vector.extract_strided_slice %9 {offsets = [0, 0], sizes = [33, 128], strides = [1, 1]} : vector<33x256xf32> to vector<33x128xf32>
    %11 = vector.extract_strided_slice %9 {offsets = [0, 128], sizes = [33, 128], strides = [1, 1]} : vector<33x256xf32> to vector<33x128xf32>
    %12 = vector.extract_strided_slice %10 {offsets = [0, 0], sizes = [32, 128], strides = [1, 1]} : vector<33x128xf32> to vector<32x128xf32>
    %13 = vector.extract_strided_slice %11 {offsets = [0, 0], sizes = [32, 128], strides = [1, 1]} : vector<33x128xf32> to vector<32x128xf32>
    %14 = arith.mulf %12, %13 : vector<32x128xf32>
    %cst_5 = arith.constant dense<0.000000e+00> : vector<128xf32>
    %15 = vector.multi_reduction <add>, %14, %cst_5 [0] : vector<32x128xf32> to vector<128xf32>
    %16 = vector.shape_cast %15 : vector<128xf32> to vector<1x128xf32>
    %17 = vector.extract_strided_slice %10 {offsets = [32, 0], sizes = [1, 128], strides = [1, 1]} : vector<33x128xf32> to vector<1x128xf32>
    %18 = vector.extract_strided_slice %11 {offsets = [32, 0], sizes = [1, 128], strides = [1, 1]} : vector<33x128xf32> to vector<1x128xf32>
    %cst_6 = arith.constant 9.99999993E-9 : f32
    %cst_7 = arith.constant 9.99999993E-9 : f32
    %19 = arith.mulf %cst_6, %cst_7 : f32
    %20 = arith.mulf %17, %18 : vector<1x128xf32>
    %21 = vector.broadcast %19 : f32 to vector<1x128xf32>
    %22 = arith.maximumf %20, %21 : vector<1x128xf32>
    %23 = math.rsqrt %22 : vector<1x128xf32>
    %24 = arith.mulf %16, %23 : vector<1x128xf32>
    %c0_8 = arith.constant 0 : index
    %25 = memref.load %arg1[%c0_8] : memref<1xf32, #tpu.memory_space<smem>>
    %26 = vector.broadcast %25 : f32 to vector<1x128xf32>
    %27 = arith.subf %26, %24 : vector<1x128xf32>
    %cst_9 = arith.constant 0.000000e+00 : f32
    %28 = vector.broadcast %cst_9 : f32 to vector<1x128xf32>
    %29 = arith.maximumf %27, %28 : vector<1x128xf32>
    %cst_10 = arith.constant 0.000000e+00 : f32
    %30 = vector.broadcast %cst_10 : f32 to vector<1x128xf32>
    %31 = arith.cmpf ogt, %2, %30 : vector<1x128xf32>
    %32 = arith.extui %31 : vector<1x128xi1> to vector<1x128xi32>
    %33 = arith.sitofp %32 : vector<1x128xi32> to vector<1x128xf32>
    %34 = arith.mulf %29, %33 : vector<1x128xf32>
    %c0_11 = arith.constant 0 : index
    %c0_12 = arith.constant 0 : index
    %35 = vector.load %arg5[%c0_11, %c0_12] : memref<1x128xf32, #tpu.memory_space<vmem>>, vector<1x128xf32>
    tpu.vector_store %arg5[%c0_11, %c0_12], %34 {strides = array<i32>} : memref<1x128xf32, #tpu.memory_space<vmem>>, vector<1x128xf32>,
    %c0_13 = arith.constant 0 : index
    %c0_14 = arith.constant 0 : index
    %36 = vector.load %arg6[%c0_13, %c0_14] : memref<1x128xf32, #tpu.memory_space<vmem>>, vector<1x128xf32>
    tpu.vector_store %arg6[%c0_13, %c0_14], %33 {strides = array<i32>} : memref<1x128xf32, #tpu.memory_space<vmem>>, vector<1x128xf32>,
    return
  }
  func.func @transform_0(%arg0: i32, %arg1: memref<1xf32, #tpu.memory_space<smem>>) -> (i32, i32) {
    %c0_i32 = arith.constant 0 : i32
    %c0_i32_0 = arith.constant 0 : i32
    %c0_i32_1 = arith.constant 0 : i32
    return %c0_i32, %c0_i32_0 : i32, i32
  }
  func.func @transform_1(%arg0: i32, %arg1: memref<1xf32, #tpu.memory_space<smem>>) -> (i32, i32) {
    %c0_i32 = arith.constant 0 : i32
    %c0_i32_0 = arith.constant 0 : i32
    return %c0_i32, %arg0 : i32, i32
  }
  func.func @transform_2(%arg0: i32, %arg1: memref<1xf32, #tpu.memory_space<smem>>) -> (i32, i32) {
    %c0_i32 = arith.constant 0 : i32
    %c0_i32_0 = arith.constant 0 : i32
    return %c0_i32, %arg0 : i32, i32
  }
  func.func @transform_3(%arg0: i32, %arg1: memref<1xf32, #tpu.memory_space<smem>>) -> (i32, i32) {
    %c0_i32 = arith.constant 0 : i32
    %c0_i32_0 = arith.constant 0 : i32
    return %c0_i32, %arg0 : i32, i32
  }
  func.func @transform_4(%arg0: i32, %arg1: memref<1xf32, #tpu.memory_space<smem>>) -> (i32, i32) {
    %c0_i32 = arith.constant 0 : i32
    %c0_i32_0 = arith.constant 0 : i32
    return %c0_i32, %arg0 : i32, i32
  }
}

</mosaic_0001>

<llo_original>
// kernel: tpu_custom_call.1
$region0: #{tpu_custom_call.1}
  #allocation0 [shape = 'u32[]', space=smem, size = 0x4, offset = 0x4, fixed_abs, tag = 'smem constant byte address 0x4 - core index']
  #allocation1 [shape = 'u32[72,128]{1,0:T(1,128)}', space=vmem, size = 0x9000, scoped, tag = 'internal scratch']
  #allocation2 [shape = 's32[1]{0}', space=sflag, size = 0x4, scoped, tag = 'scoped memory for tpu_custom_call.1']
  #allocation3 [shape = 'f32[1]{0:T(128)S(6)}', space=smem, size = 0x200, scoped, tag = 'prefetched SMEM operand 0']
  %s0 = inlined_call_operand.<no memory space> [shape: f32[1], index: 0, kind: input, shape index: {}]
  %s1 = inlined_call_operand.hbm [shape: bf16[33,128], index: 1, kind: input, shape index: {}]
  %s2 = inlined_call_operand.vmem [shape: s32[1,256], index: 2, kind: input, shape index: {}]
  %s3 = inlined_call_operand.vmem [shape: f32[1,128], index: 3, kind: input, shape index: {}]
  %s4 = inlined_call_operand.hbm [shape: f32[1,128], index: 4, kind: output, shape index: {0}]
  %s5 = inlined_call_operand.hbm [shape: f32[1,128], index: 5, kind: output, shape index: {1}]
  %6 = xla_tuple %s4, %s5
  %s7 = sld [smem:[#allocation0]]
  $region34: #{tpu_custom_call.1} parent=0
    _
  %s9 = ssub.s32 1, %s7
  %s10 = scalar_select 0, %s9, %s7
  %11 = sst [smem:[#allocation3]] %s0
  $region1: #{tpu_custom_call.1} parent=0
    #allocation4 [shape = 'u8[10240]{0}', space=vmem, size = 0x2800, scoped, tag = 'input window, operand 1, single buffered']
    #allocation5 [shape = 's32[1]{0}', space=sflag, size = 0x4, scoped, tag = 'scoped memory for tpu_custom_call.1']
    #allocation6 [shape = 's32[1]{0}', space=sflag, size = 0x4, scoped, tag = 'scoped memory for tpu_custom_call.1']
    #allocation7 [shape = 'u8[512]{0}', space=vmem, size = 0x400, scoped, tag = 'output window, operand 0, single buffered']
    #allocation8 [shape = 'u8[512]{0}', space=vmem, size = 0x400, scoped, tag = 'output window, operand 1, single buffered']
    #allocation9 [shape = 's32[1]{0}', space=sflag, size = 0x4, scoped, tag = 'scoped memory for tpu_custom_call.1']
    %12 = vsyncpa [#allocation5], 0
    %13 = vsyncpa [#allocation6], 0
    %14 = vsyncpa [#allocation9], 0
    // Predicated region
    $region2: #{tpu_custom_call.1} parent=1 // pred_check
      _
    $region3: #{tpu_custom_call.1} parent=1 // pred_check_branch
      %16 = sbr.rel (0) target = $region5
    $region4: #{tpu_custom_call.1} parent=1 // pred_region
      %18 = vsyncadd [#allocation5], 0
      %s19 = sshll.u32 %s1, 4
      %s20 = int_to_ptr.hbm [resolvable:$true] %s19
      %s21 = sshll.u32 [#allocation4], 4
      %s22 = int_to_ptr.vmem [resolvable:$true] %s21
      %27 = dma.hbm_to_vmem [thread:$0]  %s20, 320, %s22, [#allocation5], 64, 64, 4
    $region5: #{tpu_custom_call.1} parent=1 // pred_fallthru
      _
    // Predicated region
    $region6: #{tpu_custom_call.1} parent=1 // pred_check
      _
    $region7: #{tpu_custom_call.1} parent=1 // pred_check_branch
      %29 = sbr.rel (0) target = $region9
    $region8: #{tpu_custom_call.1} parent=1 // pred_region
      _
    $region9: #{tpu_custom_call.1} parent=1 // pred_fallthru
      _
    // Predicated region
    $region10: #{tpu_custom_call.1} parent=1 // pred_check
      _
    $region11: #{tpu_custom_call.1} parent=1 // pred_check_branch
      %31 = sbr.rel (0) target = $region13
    $region12: #{tpu_custom_call.1} parent=1 // pred_region
      _
    $region13: #{tpu_custom_call.1} parent=1 // pred_fallthru
      _
    // Predicated region
    $region14: #{tpu_custom_call.1} parent=1 // pred_check
      _
    $region15: #{tpu_custom_call.1} parent=1 // pred_check_branch
      %33 = sbr.rel (0) target = $region17
    $region16: #{tpu_custom_call.1} parent=1 // pred_region
      %35 = dma.done [#allocation5], 320
    $region17: #{tpu_custom_call.1} parent=1 // pred_fallthru
      _
    %v36 = vld [vmem:[#allocation4] sm:$0xf]
    %v37 = vld [vmem:[#allocation4 + $0x4] sm:$0xf]
    %v38 = vld [vmem:[#allocation4 + $0x8] sm:$0xf]
    %v39 = vld [vmem:[#allocation4 + $0xc] sm:$0xf]
    %v40 = vld [vmem:[#allocation4 + $0x10] sm:$0x1]
    %v41 = vld [vmem:[%s2] sm:$0x3]
    %v42 = vld [vmem:[%s3] sm:$0x1]
    %v43 = vlaneseq
    %v44 = vshrl.u32 %v43, 7
    %v45 = vadd.s32 %v44, 8
    %v46 = vadd.s32 %v44, 16
    %v47 = vadd.s32 %v44, 24
    %v48 = vadd.s32 %v44, 32
    %v49 = vadd.s32 %v44, 40
    %v50 = vadd.s32 %v44, 48
    %v51 = vadd.s32 %v44, 56
    %v52 = vadd.s32 %v44, 64
    %v53 = vadd.s32 %v44, 72
    %v54 = vadd.s32 %v44, 80
    %v55 = vadd.s32 %v44, 88
    %v56 = vadd.s32 %v44, 96
    %v57 = vadd.s32 %v44, 104
    %v58 = vadd.s32 %v44, 112
    %v59 = vadd.s32 %v44, 120
    %v60 = vperm.slane %v41, 0
    %v61 = vperm.slane %v41, 1
    %vm62 = vcmp.eq.s32.totalorder %v44, %v60
    %vm63 = vcmp.eq.s32.totalorder %v44, %v61
    %vm64 = vcmp.eq.s32.totalorder %v45, %v60
    %vm65 = vcmp.eq.s32.totalorder %v45, %v61
    %vm66 = vcmp.eq.s32.totalorder %v46, %v60
    %vm67 = vcmp.eq.s32.totalorder %v46, %v61
    %vm68 = vcmp.eq.s32.totalorder %v47, %v60
    %vm69 = vcmp.eq.s32.totalorder %v47, %v61
    %vm70 = vcmp.eq.s32.totalorder %v48, %v60
    %vm71 = vcmp.eq.s32.totalorder %v48, %v61
    %vm72 = vcmp.eq.s32.totalorder %v49, %v60
    %vm73 = vcmp.eq.s32.totalorder %v49, %v61
    %vm74 = vcmp.eq.s32.totalorder %v50, %v60
    %vm75 = vcmp.eq.s32.totalorder %v50, %v61
    %vm76 = vcmp.eq.s32.totalorder %v51, %v60
    %vm77 = vcmp.eq.s32.totalorder %v51, %v61
    %vm78 = vcmp.eq.s32.totalorder %v52, %v60
    %vm79 = vcmp.eq.s32.totalorder %v52, %v61
    %vm80 = vcmp.eq.s32.totalorder %v53, %v60
    %vm81 = vcmp.eq.s32.totalorder %v53, %v61
    %vm82 = vcmp.eq.s32.totalorder %v54, %v60
    %vm83 = vcmp.eq.s32.totalorder %v54, %v61
    %vm84 = vcmp.eq.s32.totalorder %v55, %v60
    %vm85 = vcmp.eq.s32.totalorder %v55, %v61
    %vm86 = vcmp.eq.s32.totalorder %v56, %v60
    %vm87 = vcmp.eq.s32.totalorder %v56, %v61
    %vm88 = vcmp.eq.s32.totalorder %v57, %v60
    %vm89 = vcmp.eq.s32.totalorder %v57, %v61
    %vm90 = vcmp.eq.s32.totalorder %v58, %v60
    %vm91 = vcmp.eq.s32.totalorder %v58, %v61
    %vm92 = vcmp.eq.s32.totalorder %v59, %v60
    %vm93 = vcmp.eq.s32.totalorder %v59, %v61
    %v94 = vsel %vm62, 1, 0
    %v95 = vsel %vm63, 1, 0
    %v96 = vsel %vm64, 1, 0
    %v97 = vsel %vm65, 1, 0
    %v98 = vsel %vm66, 1, 0
    %v99 = vsel %vm67, 1, 0
    %v100 = vsel %vm68, 1, 0
    %v101 = vsel %vm69, 1, 0
    %v102 = vsel %vm70, 1, 0
    %v103 = vsel %vm71, 1, 0
    %v104 = vsel %vm72, 1, 0
    %v105 = vsel %vm73, 1, 0
    %v106 = vsel %vm74, 1, 0
    %v107 = vsel %vm75, 1, 0
    %v108 = vsel %vm76, 1, 0
    %v109 = vsel %vm77, 1, 0
    %v110 = vsel %vm78, 1, 0
    %v111 = vsel %vm79, 1, 0
    %v112 = vsel %vm80, 1, 0
    %v113 = vsel %vm81, 1, 0
    %v114 = vsel %vm82, 1, 0
    %v115 = vsel %vm83, 1, 0
    %v116 = vsel %vm84, 1, 0
    %v117 = vsel %vm85, 1, 0
    %v118 = vsel %vm86, 1, 0
    %v119 = vsel %vm87, 1, 0
    %v120 = vsel %vm88, 1, 0
    %v121 = vsel %vm89, 1, 0
    %v122 = vsel %vm90, 1, 0
    %v123 = vsel %vm91, 1, 0
    %v124 = vsel %vm92, 1, 0
    %v125 = vsel %vm93, 1, 0
    %v126 = vcvt.s32.f32 %v94
    %v127 = vcvt.s32.f32 %v95
    %v128 = vcvt.s32.f32 %v96
    %v129 = vcvt.s32.f32 %v97
    %v130 = vcvt.s32.f32 %v98
    %v131 = vcvt.s32.f32 %v99
    %v132 = vcvt.s32.f32 %v100
    %v133 = vcvt.s32.f32 %v101
    %v134 = vcvt.s32.f32 %v102
    %v135 = vcvt.s32.f32 %v103
    %v136 = vcvt.s32.f32 %v104
    %v137 = vcvt.s32.f32 %v105
    %v138 = vcvt.s32.f32 %v106
    %v139 = vcvt.s32.f32 %v107
    %v140 = vcvt.s32.f32 %v108
    %v141 = vcvt.s32.f32 %v109
    %v142 = vcvt.s32.f32 %v110
    %v143 = vcvt.s32.f32 %v111
    %v144 = vcvt.s32.f32 %v112
    %v145 = vcvt.s32.f32 %v113
    %v146 = vcvt.s32.f32 %v114
    %v147 = vcvt.s32.f32 %v115
    %v148 = vcvt.s32.f32 %v116
    %v149 = vcvt.s32.f32 %v117
    %v150 = vcvt.s32.f32 %v118
    %v151 = vcvt.s32.f32 %v119
    %v152 = vcvt.s32.f32 %v120
    %v153 = vcvt.s32.f32 %v121
    %v154 = vcvt.s32.f32 %v122
    %v155 = vcvt.s32.f32 %v123
    %v156 = vcvt.s32.f32 %v124
    %v157 = vcvt.s32.f32 %v125
    %v158 = vpack.c.bf16 %v128, %v126
    %v159 = vpack.c.bf16 %v129, %v127
    %v160 = vpack.c.bf16 %v132, %v130
    %v161 = vpack.c.bf16 %v133, %v131
    %v162 = vpack.c.bf16 %v136, %v134
    %v163 = vpack.c.bf16 %v137, %v135
    %v164 = vpack.c.bf16 %v140, %v138
    %v165 = vpack.c.bf16 %v141, %v139
    %v166 = vpack.c.bf16 %v144, %v142
    %v167 = vpack.c.bf16 %v145, %v143
    %v168 = vpack.c.bf16 %v148, %v146
    %v169 = vpack.c.bf16 %v149, %v147
    %v170 = vpack.c.bf16 %v152, %v150
    %v171 = vpack.c.bf16 %v153, %v151
    %v172 = vpack.c.bf16 %v156, %v154
    %v173 = vpack.c.bf16 %v157, %v155
    %v179 = vunpack.c.l.b16 %v36
    %v180 = vunpack.c.l.b16 %v37
    %v181 = vunpack.c.l.b16 %v38
    %v182 = vunpack.c.l.b16 %v39
    %v183 = vunpack.c.l.b16 %v40
    %v184 = vpack.c.b16 %v180, %v179
    %v185 = vpack.c.b16 %v182, %v181
    %v186 = vpack.c.b16 %v183, %v183
    %190 = vmatpush.bf16.msra.mxu0 %v172
    %191 = vmatpush.bf16.msra.mxu0 %v170
    %192 = vmatpush.bf16.msra.mxu0 %v168
    %193 = vmatpush.bf16.msra.mxu0 %v166
    %194 = vmatpush.bf16.msra.mxu0 %v164
    %195 = vmatpush.bf16.msra.mxu0 %v162
    %196 = vmatpush.bf16.msra.mxu0 %v160
    %197 = vmatpush.bf16.msra.mxu0 %v158
    %198 = vmatmul.bf16.gmra.mxu0 %v184
    %v199 = vpop.f32.mrf.mxu0
    %v200 = vadd.f32 0.0, %v199
    %v201 = vpop.f32.mrf.mxu0
    %v202 = vadd.f32 0.0, %v201
    %203 = vmatmul.bf16.gmra.mxu0 %v185
    %v204 = vpop.f32.mrf.mxu0
    %v205 = vadd.f32 0.0, %v204
    %v206 = vpop.f32.mrf.mxu0
    %v207 = vadd.f32 0.0, %v206
    %208 = vmatmul.bf16.gmra.mxu0 %v186
    %v209 = vpop.f32.mrf.mxu0
    %v210 = vadd.f32 0.0, %v209
    %v211 = vpop.f32.mrf.mxu0
    %212 = vdwg.mxu0
    %213 = vmatpush.bf16.msra.mxu0 %v173
    %214 = vmatpush.bf16.msra.mxu0 %v171
    %215 = vmatpush.bf16.msra.mxu0 %v169
    %216 = vmatpush.bf16.msra.mxu0 %v167
    %217 = vmatpush.bf16.msra.mxu0 %v165
    %218 = vmatpush.bf16.msra.mxu0 %v163
    %219 = vmatpush.bf16.msra.mxu0 %v161
    %220 = vmatpush.bf16.msra.mxu0 %v159
    %221 = vmatmul.bf16.gmra.mxu0 %v184
    %v222 = vpop.f32.mrf.mxu0
    %v223 = vadd.f32 0.0, %v222
    %v224 = vpop.f32.mrf.mxu0
    %v225 = vadd.f32 0.0, %v224
    %226 = vmatmul.bf16.gmra.mxu0 %v185
    %v227 = vpop.f32.mrf.mxu0
    %v228 = vadd.f32 0.0, %v227
    %v229 = vpop.f32.mrf.mxu0
    %v230 = vadd.f32 0.0, %v229
    %231 = vmatmul.bf16.gmra.mxu0 %v186
    %v232 = vpop.f32.mrf.mxu0
    %v233 = vadd.f32 0.0, %v232
    %v234 = vpop.f32.mrf.mxu0
    %235 = vdwg.mxu0
    %v236 = vmul.f32 %v200, %v223
    %v237 = vmul.f32 %v202, %v225
    %v238 = vmul.f32 %v205, %v228
    %v239 = vmul.f32 %v207, %v230
    %v240 = vadd.f32 %v236, %v237
    %v241 = vadd.f32 %v240, %v238
    %v242 = vadd.f32 %v241, %v239
    %v243 = vrot.slane %v242, 4
    %v244 = vadd.f32 %v242, %v243
    %v245 = vrot.slane %v244, 2
    %v246 = vadd.f32 %v244, %v245
    %v247 = vrot.slane %v246, 1
    %v248 = vadd.f32 %v246, %v247
    %v249 = vmul.f32 %v210, %v233
    %v250 = vmax.f32 %v249, 1e-16
    %v251 = vrsqrt.pop %v250
    %v252 = vmul.f32 %v251, %v250
    %v253 = vmul.f32 %v252, %v251
    %v254 = vmul.f32 0.5, %v253
    %v255 = vsub.f32 1.5, %v254
    %v256 = vmul.f32 %v251, %v255
    %vm257 = vweird.f32 %v250
    %vm258 = vweird.f32 %v251
    %vm259 = vmor %vm257, %vm258
    %v260 = vsel %vm259, %v251, %v256
    %v261 = vmul.f32 %v248, %v260
    %s262 = sld [smem:[#allocation3]]
    %v263 = vstv %s262
    %v264 = vsub.f32 %v263, %v261
    %v265 = vmax.f32 %v264, 0.0
    %vm266 = vcmp.gt.f32.partialorder %v42, 0.0
    %v267 = vsel %vm266, 1, 0
    %v268 = vcvt.s32.f32 %v267
    %v269 = vmul.f32 %v265, %v268
    %270 = vst [vmem:[#allocation7] sm:$0x1] %v269
    %271 = vst [vmem:[#allocation8] sm:$0x1] %v268
    // Predicated region
    $region18: #{tpu_custom_call.1} parent=1 // pred_check
      _
    $region19: #{tpu_custom_call.1} parent=1 // pred_check_branch
      %273 = sbr.rel (0) target = $region21
    $region20: #{tpu_custom_call.1} parent=1 // pred_region
      %275 = vsyncadd [#allocation6], 0
      %s277 = sshll.u32 [#allocation7], 4
      %s278 = int_to_ptr.vmem [resolvable:$true] %s277
      %s279 = sshll.u32 %s4, 4
      %s280 = int_to_ptr.hbm [resolvable:$true] %s279
      %282 = dma.vmem_to_hbm [thread:$0]  %s278, 16, %s280, [#allocation6]
    $region21: #{tpu_custom_call.1} parent=1 // pred_fallthru
      _
    // Predicated region
    $region22: #{tpu_custom_call.1} parent=1 // pred_check
      _
    $region23: #{tpu_custom_call.1} parent=1 // pred_check_branch
      %284 = sbr.rel (0) target = $region25
    $region24: #{tpu_custom_call.1} parent=1 // pred_region
      %286 = vsyncadd [#allocation9], 0
      %s288 = sshll.u32 [#allocation8], 4
      %s289 = int_to_ptr.vmem [resolvable:$true] %s288
      %s290 = sshll.u32 %s5, 4
      %s291 = int_to_ptr.hbm [resolvable:$true] %s290
      %293 = dma.vmem_to_hbm [thread:$0]  %s289, 16, %s291, [#allocation9]
    $region25: #{tpu_custom_call.1} parent=1 // pred_fallthru
      _
    // Predicated region
    $region26: #{tpu_custom_call.1} parent=1 // pred_check
      _
    $region27: #{tpu_custom_call.1} parent=1 // pred_check_branch
      %295 = sbr.rel (0) target = $region29
    $region28: #{tpu_custom_call.1} parent=1 // pred_region
      %297 = dma.done [#allocation6], 16
    $region29: #{tpu_custom_call.1} parent=1 // pred_fallthru
      _
    // Predicated region
    $region30: #{tpu_custom_call.1} parent=1 // pred_check
      _
    $region31: #{tpu_custom_call.1} parent=1 // pred_check_branch
      %299 = sbr.rel (0) target = $region33
    $region32: #{tpu_custom_call.1} parent=1 // pred_region
      %301 = dma.done [#allocation9], 16
    $region33: #{tpu_custom_call.1} parent=1 // pred_fallthru
      _
    %302 = vsyncpa [#allocation5], 1
    %303 = vsyncpa [#allocation6], 1
    %304 = vsyncpa [#allocation9], 1

</llo_original>
